<compile_context>
chip_gen: v6e
topology: v6e:2x2x1
jax: 0.10.0
libtpu: 0.0.40
codegen_flags: <defaults>
</compile_context>

<pallas_src>
import functools

import jax
import jax.numpy as jnp
import numpy as np
from jax.experimental import pallas as pl
from jax.experimental.pallas import tpu as pltpu


def _focal_kernel(labels_ref, logits_ref, out_ref, *, num_classes, gamma,
                  lb_smooth, ignore_index, unroll_classes):
    """One grid step: a (C, S, 128) logits slab; pixels fill sublanes+lanes."""
    lbl = labels_ref[0]                                   # (S, 128)
    if lbl.dtype != jnp.int32:
        lbl = lbl.astype(jnp.int32)

    if ignore_index is not None:
        ignore = lbl == ignore_index
        lbl = jnp.where(ignore, 0, lbl)

    c = logits_ref.shape[1]

    if unroll_classes:
        # Statically unrolled class loop: every temp is a dense (S, 128) slab;
        # no one-hot / iota materialization, no half-empty sublanes.
        rows = [logits_ref[0, j].astype(jnp.float32) for j in range(c)]
        m = rows[0]
        for j in range(1, c):
            m = jnp.maximum(m, rows[j])
        denom = None
        sum_xs = None
        xs_t = None
        for j in range(c):
            xsj = rows[j] - m
            ej = jnp.exp(xsj)
            denom = ej if denom is None else denom + ej
            sum_xs = xsj if sum_xs is None else sum_xs + xsj
            sel = lbl == j
            if xs_t is None:
                xs_t = jnp.where(sel, xsj, 0.0)
            else:
                xs_t = jnp.where(sel, xsj, xs_t)
    else:
        x = logits_ref[0].astype(jnp.float32)             # (C, S, 128)
        m = jnp.max(x, axis=0)                            # (S, 128)
        xs = x - m[None]
        denom = jnp.sum(jnp.exp(xs), axis=0)
        sum_xs = jnp.sum(xs, axis=0)
        cls = jax.lax.broadcasted_iota(jnp.int32, x.shape, 0)
        xs_t = jnp.sum(jnp.where(cls == lbl[None], xs, 0.0), axis=0)

    # Numerically stable log-softmax pieces (per pixel).
    logdenom = jnp.log(denom)                             # (S, 128)
    logp_t = xs_t - logdenom                              # log p_target
    p_t = jnp.exp(logp_t)                                 # softmax at target
    sum_logp = sum_xs - c * logdenom                      # sum_j log p_j

    one_minus_pt = 1.0 - p_t
    if gamma == 2:
        difficulty_t = one_minus_pt * one_minus_pt        # avoid pow lowering
    elif gamma == 1:
        difficulty_t = one_minus_pt
    elif gamma == 0:
        difficulty_t = jnp.ones_like(one_minus_pt)
    else:
        difficulty_t = one_minus_pt ** gamma

    lb_pos = 1.0 - lb_smooth
    lb_neg = lb_smooth / (num_classes - 1)

    # loss = -( lb_neg * sum_{j!=t} logp_j + lb_pos * (1-p_t)^gamma * logp_t )
    row_loss = -(lb_neg * (sum_logp - logp_t) + lb_pos * difficulty_t * logp_t)
    if ignore_index is not None:
        # Match the PyTorch reference: zero the numerator, keep N as divisor.
        row_loss = jnp.where(ignore, 0.0, row_loss)

    # Lane-dense per-tile partial sums: reduce over the sublane axis only;
    # the host-side jnp.sum finishes the cross-lane reduction (single
    # unmasked 128-wide store, no in-kernel cross-lane rotate chain).
    out_ref[0, 0] = jnp.sum(row_loss, axis=0, keepdims=True)   # (1, 128)


def _divisors(n):
    return [d for d in range(1, n + 1) if n % d == 0]


def _pick_tile_hw(hw, c, logit_item, lbl_item, target_bytes=4 << 20,
                  max_tile=65536):
    """Largest 128-multiple dividing H*W near ~target_bytes per logits block,
    with a sublane count respecting the dtype tiling rules (8/16/32, 128)."""
    # TODO(synk): pad H*W to a multiple of 128 (with a masked tail) to support
    # arbitrary spatial sizes instead of asserting divisibility.
    assert hw % 128 == 0, "H*W must be a multiple of 128 for the lane layout"
    n128 = hw // 128
    sub_mult = max(32 // logit_item, 32 // lbl_item)   # f32:8, bf16:16, i8:32
    limit_rows = max(1, min(max_tile // 128,
                            target_bytes // max(1, c * logit_item * 128)))
    legal = [d for d in _divisors(n128) if d % sub_mult == 0 or d == n128]
    fitting = [d for d in legal if d <= limit_rows]
    d = max(fitting) if fitting else min(legal)
    return d * 128


def focal_loss_with_smoothing(logits, label, *, num_classes=None, gamma=2,
                              lb_smooth=0.1, ignore_index=None, alpha=0.25,
                              size_average=True, tile_hw=None):
    # NOTE: `alpha` / `size_average` are accepted for parity with the PyTorch
    # module but, exactly like the reference forward pass, never enter the
    # computed loss.
    b, c, h, w = logits.shape
    if num_classes is None:
        num_classes = c
    # lb_neg uses num_classes while class sums run over C; they must agree.
    assert num_classes == c, "num_classes must match the logits channel dim"
    hw = h * w
    n = b * hw
    logit_item = jnp.dtype(logits.dtype).itemsize
    lbl_item = jnp.dtype(label.dtype).itemsize

    if tile_hw is None:
        tile_hw = _pick_tile_hw(hw, c, logit_item, lbl_item)
    assert hw % tile_hw == 0 and tile_hw % 128 == 0
    s = tile_hw // 128
    n128 = hw // 128
    tiles_per_b = n128 // s

    # Native-layout views: free reshapes, no transpose, no host-side casts.
    x = logits.reshape(b, c, n128, 128)
    lbl = label.reshape(b, n128, 128)          # kept in its native dtype

    kernel = functools.partial(
        _focal_kernel,
        num_classes=num_classes,
        gamma=gamma,
        lb_smooth=float(lb_smooth),
        ignore_index=ignore_index,
        unroll_classes=(c <= 8),
    )

    # Need-based VMEM budget: double-buffered input blocks + output block +
    # in-kernel f32 temporaries, 1.5x margin, capped at 48 MiB (leaves
    # headroom on v7x's 64 MiB VMEM; safe on v5e/v6e as well).
    logits_block = c * tile_hw * logit_item
    labels_block = tile_hw * lbl_item
    temps = 3 * c * tile_hw * 4
    need = 2 * (logits_block + labels_block) + 2 * 128 * 4 + temps
    vmem_limit = int(min(48 * 1024 * 1024,
                         max(16 * 1024 * 1024, int(1.5 * need))))

    cost = pl.CostEstimate(
        flops=int(n * (6 * c + 12)),
        transcendentals=int(n * (c + 2)),
        bytes_accessed=int(n * c * logit_item + n * lbl_item
                           + b * tiles_per_b * 128 * 4),
    )

    partials = pl.pallas_call(
        kernel,
        out_shape=jax.ShapeDtypeStruct((b, tiles_per_b, 1, 128), jnp.float32),
        grid=(b, tiles_per_b),
        in_specs=[
            pl.BlockSpec((1, s, 128), lambda bi, ti: (bi, ti, 0)),
            pl.BlockSpec((1, c, s, 128), lambda bi, ti: (bi, 0, ti, 0)),
        ],
        out_specs=pl.BlockSpec((1, 1, 1, 128), lambda bi, ti: (bi, ti, 0, 0)),
        compiler_params=pltpu.CompilerParams(
            dimension_semantics=("parallel", "parallel"),
            vmem_limit_bytes=vmem_limit,
        ),
        cost_estimate=cost,
    )(lbl, x)

    # Sum raw partials, apply 1/N exactly once.  This matches the reference
    # module: `loss.mean()` over ALL pixels, with ignored pixels zeroed in the
    # numerator but still counted in N.
    return jnp.sum(partials) * (1.0 / n)


def _reference(logits_nchw, label, num_classes, gamma=2, lb_smooth=0.1):
    logits = logits_nchw.astype(jnp.float32)
    p = jax.nn.softmax(logits, axis=1)
    logp = jax.nn.log_softmax(logits, axis=1)
    one_hot = jax.nn.one_hot(label, num_classes, axis=1, dtype=jnp.float32)
    pt = one_hot * p
    difficulty = (1.0 - pt) ** gamma
    lb_pos = 1.0 - lb_smooth
    lb_neg = lb_smooth / (num_classes - 1)
    lb_one_hot = lb_neg + one_hot * (lb_pos - lb_neg)
    loss = -jnp.sum(difficulty * logp * lb_one_hot, axis=1)
    return loss.mean()


if __name__ == "__main__":
    B, C, H, W = 2, 4, 16, 16
    key = jax.random.PRNGKey(0)
    k_logits, k_label = jax.random.split(key)
    logits = jax.random.normal(k_logits, (B, C, H, W), dtype=jnp.float32)
    label = jax.random.randint(k_label, (B, H, W), 0, C, dtype=jnp.int32)

    loss = focal_loss_with_smoothing(logits, label, num_classes=C,
                                     gamma=2, lb_smooth=0.1)
    loss = jax.block_until_ready(loss)

    ref = jax.block_until_ready(_reference(logits, label, C, gamma=2,
                                           lb_smooth=0.1))
    np.testing.assert_allclose(np.asarray(loss), np.asarray(ref),
                               rtol=1e-5, atol=1e-5)
    print("KERNEL_OK")
</pallas_src>

<mosaic_0001>
module attributes {stable_mosaic.version = 11 : i64} {
  func.func @_focal_kernel(%arg0: i32, %arg1: i32, %arg2: memref<1x2x128xi32, #tpu.memory_space<vmem>>, %arg3: memref<1x4x2x128xf32, #tpu.memory_space<vmem>>, %arg4: memref<1x1x1x128xf32, #tpu.memory_space<vmem>>) attributes {dimension_semantics = [#tpu.dimension_semantics<parallel>, #tpu.dimension_semantics<parallel>], iteration_bounds = array<i64: 2, 1>, scalar_prefetch = 0 : i64, scratch_operands = 0 : i64, tpu.core_type = #tpu.core_type<tc>, window_params = [{transform_indices = @transform_0, window_bounds = array<i64: 1, 2, 128>}, {transform_indices = @transform_1, window_bounds = array<i64: 1, 4, 2, 128>}, {transform_indices = @transform_2, window_bounds = array<i64: 1, 1, 1, 128>}]} {
    %c0 = arith.constant 0 : index
    %c0_0 = arith.constant 0 : index
    %c0_1 = arith.constant 0 : index
    %0 = vector.load %arg2[%c0, %c0_0, %c0_1] : memref<1x2x128xi32, #tpu.memory_space<vmem>>, vector<1x2x128xi32>
    %1 = vector.shape_cast %0 : vector<1x2x128xi32> to vector<2x128xi32>
    %c0_2 = arith.constant 0 : index
    %c0_3 = arith.constant 0 : index
    %c0_4 = arith.constant 0 : index
    %c0_5 = arith.constant 0 : index
    %2 = vector.load %arg3[%c0_2, %c0_3, %c0_4, %c0_5] : memref<1x4x2x128xf32, #tpu.memory_space<vmem>>, vector<1x1x2x128xf32>
    %3 = vector.shape_cast %2 : vector<1x1x2x128xf32> to vector<2x128xf32>
    %c0_6 = arith.constant 0 : index
    %c1 = arith.constant 1 : index
    %c0_7 = arith.constant 0 : index
    %c0_8 = arith.constant 0 : index
    %4 = vector.load %arg3[%c0_6, %c1, %c0_7, %c0_8] : memref<1x4x2x128xf32, #tpu.memory_space<vmem>>, vector<1x1x2x128xf32>
    %5 = vector.shape_cast %4 : vector<1x1x2x128xf32> to vector<2x128xf32>
    %c0_9 = arith.constant 0 : index
    %c2 = arith.constant 2 : index
    %c0_10 = arith.constant 0 : index
    %c0_11 = arith.constant 0 : index
    %6 = vector.load %arg3[%c0_9, %c2, %c0_10, %c0_11] : memref<1x4x2x128xf32, #tpu.memory_space<vmem>>, vector<1x1x2x128xf32>
    %7 = vector.shape_cast %6 : vector<1x1x2x128xf32> to vector<2x128xf32>
    %c0_12 = arith.constant 0 : index
    %c3 = arith.constant 3 : index
    %c0_13 = arith.constant 0 : index
    %c0_14 = arith.constant 0 : index
    %8 = vector.load %arg3[%c0_12, %c3, %c0_13, %c0_14] : memref<1x4x2x128xf32, #tpu.memory_space<vmem>>, vector<1x1x2x128xf32>
    %9 = vector.shape_cast %8 : vector<1x1x2x128xf32> to vector<2x128xf32>
    %10 = arith.maximumf %3, %5 : vector<2x128xf32>
    %11 = arith.maximumf %10, %7 : vector<2x128xf32>
    %12 = arith.maximumf %11, %9 : vector<2x128xf32>
    %13 = arith.subf %3, %12 : vector<2x128xf32>
    %14 = math.exp %13 : vector<2x128xf32>
    %c0_i32 = arith.constant 0 : i32
    %15 = vector.broadcast %c0_i32 : i32 to vector<2x128xi32>
    %16 = arith.cmpi eq, %1, %15 : vector<2x128xi32>
    %cst = arith.constant 0.000000e+00 : f32
    %17 = vector.broadcast %cst : f32 to vector<2x128xf32>
    %18 = arith.select %16, %13, %17 : vector<2x128xi1>, vector<2x128xf32>
    %19 = arith.subf %5, %12 : vector<2x128xf32>
    %20 = math.exp %19 : vector<2x128xf32>
    %21 = arith.addf %14, %20 : vector<2x128xf32>
    %22 = arith.addf %13, %19 : vector<2x128xf32>
    %c1_i32 = arith.constant 1 : i32
    %23 = vector.broadcast %c1_i32 : i32 to vector<2x128xi32>
    %24 = arith.cmpi eq, %1, %23 : vector<2x128xi32>
    %25 = arith.select %24, %19, %18 : vector<2x128xi1>, vector<2x128xf32>
    %26 = arith.subf %7, %12 : vector<2x128xf32>
    %27 = math.exp %26 : vector<2x128xf32>
    %28 = arith.addf %21, %27 : vector<2x128xf32>
    %29 = arith.addf %22, %26 : vector<2x128xf32>
    %c2_i32 = arith.constant 2 : i32
    %30 = vector.broadcast %c2_i32 : i32 to vector<2x128xi32>
    %31 = arith.cmpi eq, %1, %30 : vector<2x128xi32>
    %32 = arith.select %31, %26, %25 : vector<2x128xi1>, vector<2x128xf32>
    %33 = arith.subf %9, %12 : vector<2x128xf32>
    %34 = math.exp %33 : vector<2x128xf32>
    %35 = arith.addf %28, %34 : vector<2x128xf32>
    %36 = arith.addf %29, %33 : vector<2x128xf32>
    %c3_i32 = arith.constant 3 : i32
    %37 = vector.broadcast %c3_i32 : i32 to vector<2x128xi32>
    %38 = arith.cmpi eq, %1, %37 : vector<2x128xi32>
    %39 = arith.select %38, %33, %32 : vector<2x128xi1>, vector<2x128xf32>
    %40 = math.log %35 : vector<2x128xf32>
    %41 = arith.subf %39, %40 : vector<2x128xf32>
    %42 = math.exp %41 : vector<2x128xf32>
    %cst_15 = arith.constant 4.000000e+00 : f32
    %43 = vector.broadcast %cst_15 : f32 to vector<2x128xf32>
    %44 = arith.mulf %43, %40 : vector<2x128xf32>
    %45 = arith.subf %36, %44 : vector<2x128xf32>
    %cst_16 = arith.constant 1.000000e+00 : f32
    %46 = vector.broadcast %cst_16 : f32 to vector<2x128xf32>
    %47 = arith.subf %46, %42 : vector<2x128xf32>
    %48 = arith.mulf %47, %47 : vector<2x128xf32>
    %49 = arith.subf %45, %41 : vector<2x128xf32>
    %cst_17 = arith.constant 0.0333333351 : f32
    %50 = vector.broadcast %cst_17 : f32 to vector<2x128xf32>
    %51 = arith.mulf %50, %49 : vector<2x128xf32>
    %cst_18 = arith.constant 0.899999976 : f32
    %52 = vector.broadcast %cst_18 : f32 to vector<2x128xf32>
    %53 = arith.mulf %52, %48 : vector<2x128xf32>
    %54 = arith.mulf %53, %41 : vector<2x128xf32>
    %55 = arith.addf %51, %54 : vector<2x128xf32>
    %cst_19 = arith.constant 0.000000e+00 : f32
    %56 = vector.broadcast %cst_19 : f32 to vector<2x128xf32>
    %57 = arith.subf %56, %55 : vector<2x128xf32>
    %cst_20 = arith.constant dense<0.000000e+00> : vector<128xf32>
    %58 = vector.multi_reduction <add>, %57, %cst_20 [0] : vector<2x128xf32> to vector<128xf32>
    %59 = vector.shape_cast %58 : vector<128xf32> to vector<1x128xf32>
    %c0_21 = arith.constant 0 : index
    %c0_22 = arith.constant 0 : index
    %c0_23 = arith.constant 0 : index
    %c0_24 = arith.constant 0 : index
    %60 = vector.load %arg4[%c0_21, %c0_22, %c0_23, %c0_24] : memref<1x1x1x128xf32, #tpu.memory_space<vmem>>, vector<1x1x1x128xf32>
    %61 = vector.shape_cast %60 : vector<1x1x1x128xf32> to vector<1x128xf32>
    %62 = vector.shape_cast %59 : vector<1x128xf32> to vector<1x1x1x128xf32>
    tpu.vector_store %arg4[%c0_21, %c0_22, %c0_23, %c0_24], %62 {strides = array<i32>} : memref<1x1x1x128xf32, #tpu.memory_space<vmem>>, vector<1x1x1x128xf32>,
    return
  }
  func.func @transform_0(%arg0: i32, %arg1: i32) -> (i32, i32, i32) {
    %c0_i32 = arith.constant 0 : i32
    %c0_i32_0 = arith.constant 0 : i32
    return %arg0, %arg1, %c0_i32 : i32, i32, i32
  }
  func.func @transform_1(%arg0: i32, %arg1: i32) -> (i32, i32, i32, i32) {
    %c0_i32 = arith.constant 0 : i32
    %c0_i32_0 = arith.constant 0 : i32
    %c0_i32_1 = arith.constant 0 : i32
    return %arg0, %c0_i32, %arg1, %c0_i32_0 : i32, i32, i32, i32
  }
  func.func @transform_2(%arg0: i32, %arg1: i32) -> (i32, i32, i32, i32) {
    %c0_i32 = arith.constant 0 : i32
    %c0_i32_0 = arith.constant 0 : i32
    %c0_i32_1 = arith.constant 0 : i32
    return %arg0, %arg1, %c0_i32, %c0_i32_0 : i32, i32, i32, i32
  }
}

</mosaic_0001>

<llo_original>
// kernel: tpu_custom_call.1
$region0: #{tpu_custom_call.1}
  #allocation0 [shape = 'u32[]', space=smem, size = 0x4, offset = 0x4, fixed_abs, tag = 'smem constant byte address 0x4 - core index']
  #allocation1 [shape = 'u32[144,128]{1,0:T(1,128)}', space=vmem, size = 0x12000, scoped, tag = 'internal scratch']
  %s0 = inlined_call_operand.hbm [shape: s32[2,2,128], index: 0, kind: input, shape index: {}]
  %s1 = inlined_call_operand.hbm [shape: f32[2,4,2,128], index: 1, kind: input, shape index: {}]
  %s2 = inlined_call_operand.hbm [shape: f32[2,1,1,128], index: 2, kind: output, shape index: {}]
  %s3 = sld [smem:[#allocation0]]
  $region49: #{tpu_custom_call.1} parent=0
    _
  %s5 = ssub.s32 1, %s3
  %s6 = scalar_select 0, %s5, %s3
  $region1: #{tpu_custom_call.1} parent=0
    #allocation2 [shape = 'u8[2048]{0}', space=vmem, size = 0x800, scoped, tag = 'input window, operand 0']
    #allocation3 [shape = 's32[2]{0}', space=sflag, size = 0x8, scoped, tag = 'scoped memory for tpu_custom_call.1']
    #allocation4 [shape = 's32[2]{0}', space=sflag, size = 0x8, scoped, tag = 'scoped memory for tpu_custom_call.1']
    #allocation5 [shape = 'u8[8192]{0}', space=vmem, size = 0x2000, scoped, tag = 'input window, operand 1']
    #allocation6 [shape = 's32[2]{0}', space=sflag, size = 0x8, scoped, tag = 'scoped memory for tpu_custom_call.1']
    #allocation7 [shape = 'u8[1024]{0}', space=vmem, size = 0x400, scoped, tag = 'output window, operand 0']
    %7 = vsyncpa [#allocation3], 0
    %s8 = scalar_lea.sflag [#allocation3], 1
    %9 = vsyncpa %s8, 0
    %10 = vsyncpa [#allocation6], 0
    %s11 = scalar_lea.sflag [#allocation6], 1
    %12 = vsyncpa %s11, 0
    %13 = vsyncpa [#allocation4], 0
    %s14 = scalar_lea.sflag [#allocation4], 1
    %15 = vsyncpa %s14, 0
    loop: start=0, step=1, limit=4
    $region2: #{tpu_custom_call.1} parent=1 // loop_pre_header
      _
    $region3: #{tpu_custom_call.1} parent=1 // loop_header
      %s17 = sphi 0, %s21
      %p18 = scmp.ge.s32.totalorder %s17, 4
      %s24 = sphi 0, %s36
      %s25 = sphi 0, %s32
      %s26 = sphi 0, %s24
      %s27 = sphi 0, %s25
      %s28 = sphi 0, %s26
      %s29 = sphi 0, %s27
      %s41 = sphi 0, %s43
      %s44 = sphi 0, %s41
      %s45 = sphi 0, %s44
      %s61 = sphi 0, %s45
      %s69 = sphi 0, %s71
      %s72 = sphi 0, %s69
      %s73 = sphi 0, %s72
      %s89 = sphi 0, %s73
      %s97 = sphi 0, %s99
      %s100 = sphi 0, %s97
      %s101 = sphi 0, %s100
      %s117 = sphi 0, %s101
    $region4: #{tpu_custom_call.1} parent=1 // loop_header_branch
      %20 = sbr.rel (%p18) target = $region8
    $region5: #{tpu_custom_call.1} parent=1 // loop_body
      %s22 = ssub.s32 %s17, 1
      %s23 = ssub.s32 %s17, 2
      %s30 = sadd.s32 1, %s25
      %p31 = scmp.ge.s32.totalorder %s30, 1
      %s32 = scalar_select %p31, 0, %s30
      %s33 = sadd.s32 1, %s24
      %s34 = scalar_select %p31, %s33, %s24
      %p35 = scmp.ge.s32.totalorder %s34, 2
      %s36 = scalar_select %p35, 0, %s34
      %s37 = ssub.s32 %s24, %s36
      %s38 = ssub.s32 %s25, %s32
      %s39 = sor.u32 %s37, %s38
      %p40 = scmp.eq.s32.totalorder %s39, 0
      %s42 = sadd.s32 %s41, 1
      %s43 = scalar_select %p40, %s41, %s42
      %p46 = pneg %p40
      %p47 = scmp.eq.s32.totalorder %s17, 1
      %p48 = por %p46, %p47
      %p49 = scmp.ne.s32.totalorder %s41, %s44
      %p50 = scmp.eq.s32.totalorder %s17, 0
      %p51 = por %p49, %p50
      %p52 = scmp.ne.s32.totalorder %s41, %s44
      %p53 = scmp.eq.s32.totalorder %s22, 1
      %p54 = por %p52, %p53
      %p55 = scmp.ne.s32.totalorder %s44, %s45
      %p56 = scmp.eq.s32.totalorder %s22, 0
      %p57 = por %p55, %p56
      %p58 = scmp.ne.s32.totalorder %s44, %s45
      %p59 = scmp.eq.s32.totalorder %s23, 1
      %p60 = por %p58, %p59
      %p62 = scmp.ne.s32.totalorder %s45, %s61
      %p63 = scmp.eq.s32.totalorder %s23, 0
      %p64 = por %p62, %p63
      %s65 = ssub.s32 %s24, %s36
      %s66 = ssub.s32 %s25, %s32
      %s67 = sor.u32 %s65, %s66
      %p68 = scmp.eq.s32.totalorder %s67, 0
      %s70 = sadd.s32 %s69, 1
      %s71 = scalar_select %p68, %s69, %s70
      %p74 = pneg %p68
      %p75 = scmp.eq.s32.totalorder %s17, 1
      %p76 = por %p74, %p75
      %p77 = scmp.ne.s32.totalorder %s69, %s72
      %p78 = scmp.eq.s32.totalorder %s17, 0
      %p79 = por %p77, %p78
      %p80 = scmp.ne.s32.totalorder %s69, %s72
      %p81 = scmp.eq.s32.totalorder %s22, 1
      %p82 = por %p80, %p81
      %p83 = scmp.ne.s32.totalorder %s72, %s73
      %p84 = scmp.eq.s32.totalorder %s22, 0
      %p85 = por %p83, %p84
      %p86 = scmp.ne.s32.totalorder %s72, %s73
      %p87 = scmp.eq.s32.totalorder %s23, 1
      %p88 = por %p86, %p87
      %p90 = scmp.ne.s32.totalorder %s73, %s89
      %p91 = scmp.eq.s32.totalorder %s23, 0
      %p92 = por %p90, %p91
      %s93 = ssub.s32 %s24, %s36
      %s94 = ssub.s32 %s25, %s32
      %s95 = sor.u32 %s93, %s94
      %p96 = scmp.eq.s32.totalorder %s95, 0
      %s98 = sadd.s32 %s97, 1
      %s99 = scalar_select %p96, %s97, %s98
      %p102 = pneg %p96
      %p103 = scmp.eq.s32.totalorder %s17, 1
      %p104 = por %p102, %p103
      %p105 = scmp.ne.s32.totalorder %s97, %s100
      %p106 = scmp.eq.s32.totalorder %s17, 0
      %p107 = por %p105, %p106
      %p108 = scmp.ne.s32.totalorder %s97, %s100
      %p109 = scmp.eq.s32.totalorder %s22, 1
      %p110 = por %p108, %p109
      %p111 = scmp.ne.s32.totalorder %s100, %s101
      %p112 = scmp.eq.s32.totalorder %s22, 0
      %p113 = por %p111, %p112
      %p114 = scmp.ne.s32.totalorder %s100, %s101
      %p115 = scmp.eq.s32.totalorder %s23, 1
      %p116 = por %p114, %p115
      %p118 = scmp.ne.s32.totalorder %s101, %s117
      %p119 = scmp.eq.s32.totalorder %s23, 0
      %p120 = por %p118, %p119
      %p121 = scmp.le.s32.totalorder 1, %s17
      %p122 = scmp.lt.s32.totalorder %s17, 3
      %p123 = pnand %p121, %p122
      %p124 = pneg %p123
      // Predicated region
      $region9: #{tpu_custom_call.1} parent=5 // pred_check
        _
      $region10: #{tpu_custom_call.1} parent=5 // pred_check_branch
        %126 = sbr.rel (%p123) target = $region12
      $region11: #{tpu_custom_call.1} parent=5 // pred_region
        %s127 = ssub.s32 %s17, 1
      $region12: #{tpu_custom_call.1} parent=5 // pred_fallthru
        _
      %p128 = scmp.lt.s32.totalorder %s17, 2
      // Predicated region
      $region13: #{tpu_custom_call.1} parent=5 // pred_check
        %p129 = pneg %p128
      $region14: #{tpu_custom_call.1} parent=5 // pred_check_branch
        %131 = sbr.rel (%p129) target = $region16
      $region15: #{tpu_custom_call.1} parent=5 // pred_region
        // Predicated region
        $region17: #{tpu_custom_call.1} parent=15 // pred_check
          %p132 = pneg %p51
        $region18: #{tpu_custom_call.1} parent=15 // pred_check_branch
          %134 = sbr.rel (%p132) target = $region20
        $region19: #{tpu_custom_call.1} parent=15 // pred_region
          %s135 = sand.u32 %s41, 1
          %s136 = scalar_lea.sflag [#allocation3], %s135
          %s137 = sand.u32 %s41, 1
          %s138 = smul.addr %s137, 2
          %s139 = scalar_lea.vmem [#allocation2], %s138
          %s141 = ssub.s32 32, 32
          %142 = vsyncadd %s136, %s141
          %s143 = sadd.s32 %s25, %s24
          %s144 = smul.addr %s143, 32
          %s145 = scalar_lea.hbm %s0, %s144
          %s147 = sshll.u32 %s139, 4
          %s148 = int_to_ptr.vmem [resolvable:$true] %s147
          %150 = dma.hbm_to_vmem [thread:$0]  %s145, 32, %s148, %s136
        $region20: #{tpu_custom_call.1} parent=15 // pred_fallthru
          _
        // Predicated region
        $region21: #{tpu_custom_call.1} parent=15 // pred_check
          %p151 = pneg %p79
        $region22: #{tpu_custom_call.1} parent=15 // pred_check_branch
          %153 = sbr.rel (%p151) target = $region24
        $region23: #{tpu_custom_call.1} parent=15 // pred_region
          %s154 = sand.u32 %s69, 1
          %s155 = scalar_lea.sflag [#allocation6], %s154
          %s156 = sand.u32 %s69, 1
          %s157 = smul.addr %s156, 8
          %s158 = scalar_lea.vmem [#allocation5], %s157
          %s160 = ssub.s32 128, 128
          %161 = vsyncadd %s155, %s160
          %s162 = smul.addr %s24, 4
          %s163 = sadd.s32 %s25, %s162
          %s164 = smul.addr %s163, 32
          %s165 = scalar_lea.hbm %s1, %s164
          %s166 = sshll.u32 %s158, 4
          %s167 = int_to_ptr.vmem [resolvable:$true] %s166
          %172 = dma.hbm_to_vmem [thread:$0]  %s165, 128, %s167, %s155, 32, 32, 2
        $region24: #{tpu_custom_call.1} parent=15 // pred_fallthru
          _
      $region16: #{tpu_custom_call.1} parent=5 // pred_fallthru
        _
      %p173 = scmp.le.s32.totalorder 1, %s17
      %p174 = scmp.lt.s32.totalorder %s17, 3
      %p175 = pnand %p173, %p174
      %p176 = pneg %p175
      // Predicated region
      $region25: #{tpu_custom_call.1} parent=5 // pred_check
        _
      $region26: #{tpu_custom_call.1} parent=5 // pred_check_branch
        %178 = sbr.rel (%p175) target = $region28
      $region27: #{tpu_custom_call.1} parent=5 // pred_region
        %s179 = ssub.s32 %s17, 1
        %s180 = sand.u32 %s44, 1
        %s181 = scalar_lea.sflag [#allocation3], %s180
        %s182 = sand.u32 %s44, 1
        %s183 = smul.addr %s182, 2
        %s184 = scalar_lea.vmem [#allocation2], %s183
        // Predicated region
        $region29: #{tpu_custom_call.1} parent=27 // pred_check
          %p185 = pneg %p57
        $region30: #{tpu_custom_call.1} parent=27 // pred_check_branch
          %187 = sbr.rel (%p185) target = $region32
        $region31: #{tpu_custom_call.1} parent=27 // pred_region
          %188 = dma.done %s181, 32
        $region32: #{tpu_custom_call.1} parent=27 // pred_fallthru
          _
        %s189 = sand.u32 %s72, 1
        %s190 = scalar_lea.sflag [#allocation6], %s189
        %s191 = sand.u32 %s72, 1
        %s192 = smul.addr %s191, 8
        %s193 = scalar_lea.vmem [#allocation5], %s192
        // Predicated region
        $region33: #{tpu_custom_call.1} parent=27 // pred_check
          %p194 = pneg %p85
        $region34: #{tpu_custom_call.1} parent=27 // pred_check_branch
          %196 = sbr.rel (%p194) target = $region36
        $region35: #{tpu_custom_call.1} parent=27 // pred_region
          %197 = dma.done %s190, 128
        $region36: #{tpu_custom_call.1} parent=27 // pred_fallthru
          _
        %s198 = sand.u32 %s44, 1
        %s199 = scalar_lea.sflag [#allocation3], %s198
        %s200 = sand.u32 %s44, 1
        %s201 = smul.addr %s200, 2
        %s202 = scalar_lea.vmem [#allocation2], %s201
        %p203 = pneg %p57
        %p204 = pneg %p54
        %s205 = sand.u32 %s72, 1
        %s206 = scalar_lea.sflag [#allocation6], %s205
        %s207 = sand.u32 %s72, 1
        %s208 = smul.addr %s207, 8
        %s209 = scalar_lea.vmem [#allocation5], %s208
        %p210 = pneg %p85
        %p211 = pneg %p82
        %p212 = pneg %p113
        %p213 = pneg %p110
        %s214 = sand.u32 %s100, 1
        %s215 = scalar_lea.sflag [#allocation4], %s214
        %s216 = sand.u32 %s100, 1
        %s217 = scalar_lea.vmem [#allocation7], %s216
        %v218 = vld [vmem:[%s184] sm:$0x3]
        %v219 = vld [vmem:[%s193] sm:$0x3]
        %s220 = scalar_lea.vmem %s193, 2 [#allocation5]
        %v221 = vld [vmem:[%s220] sm:$0x3]
        %s222 = scalar_lea.vmem %s193, 4 [#allocation5]
        %v223 = vld [vmem:[%s222] sm:$0x3]
        %s224 = scalar_lea.vmem %s193, 6 [#allocation5]
        %v225 = vld [vmem:[%s224] sm:$0x3]
        %v226 = vmax.f32 %v219, %v221
        %v227 = vmax.f32 %v226, %v223
        %v228 = vmax.f32 %v227, %v225
        %v229 = vsub.f32 %v219, %v228
        %v230 = vmul.f32 %v229, 1.442695
        %v231 = vpow.pop %v230
        %vm232 = vcmp.eq.s32.totalorder %v218, 0
        %v233 = vsel %vm232, %v229, 0.0
        %v234 = vsub.f32 %v221, %v228
        %v235 = vmul.f32 %v234, 1.442695
        %v236 = vpow.pop %v235
        %v237 = vadd.f32 %v231, %v236
        %v238 = vadd.f32 %v229, %v234
        %vm239 = vcmp.eq.s32.totalorder %v218, 1
        %v240 = vsel %vm239, %v234, %v233
        %v241 = vsub.f32 %v223, %v228
        %v242 = vmul.f32 %v241, 1.442695
        %v243 = vpow.pop %v242
        %v244 = vadd.f32 %v237, %v243
        %v245 = vadd.f32 %v238, %v241
        %vm246 = vcmp.eq.s32.totalorder %v218, 2
        %v247 = vsel %vm246, %v241, %v240
        %v248 = vsub.f32 %v225, %v228
        %v249 = vmul.f32 %v248, 1.442695
        %v250 = vpow.pop %v249
        %v251 = vadd.f32 %v244, %v250
        %v252 = vadd.f32 %v245, %v248
        %vm253 = vcmp.eq.s32.totalorder %v218, 3
        %v254 = vsel %vm253, %v248, %v247
        %v255 = vlog2.pop %v251
        %v256 = vmul.f32 %v255, 0.6931472
        %v257 = vsub.f32 %v254, %v256
        %v258 = vmul.f32 %v257, 1.442695
        %v259 = vpow.pop %v258
        %v260 = vmul.f32 %v256, 4.0
        %v261 = vsub.f32 %v252, %v260
        %v262 = vsub.f32 1.0, %v259
        %v263 = vmul.f32 %v262, %v262
        %v264 = vsub.f32 %v261, %v257
        %v265 = vmul.f32 %v264, 0.033333335
        %v266 = vmul.f32 %v263, 0.9
        %v267 = vmul.f32 %v266, %v257
        %v268 = vadd.f32 %v265, %v267
        %v269 = vsub.f32 0.0, %v268
        %vm270 = vcmask 1041408
        %v271 = vsel %vm270, %v269, 0.0
        %v272 = vrot.slane %v271, 4
        %v273 = vadd.f32 %v271, %v272
        %v274 = vrot.slane %v273, 2
        %v275 = vadd.f32 %v273, %v274
        %v276 = vrot.slane %v275, 1
        %v277 = vadd.f32 %v275, %v276
        %278 = vst [vmem:[%s217] sm:$0x1] %v277
        %s279 = sand.u32 %s100, 1
        %s280 = scalar_lea.sflag [#allocation4], %s279
        %s281 = sand.u32 %s100, 1
        %s282 = scalar_lea.vmem [#allocation7], %s281
        // Predicated region
        $region37: #{tpu_custom_call.1} parent=27 // pred_check
          %p283 = pneg %p110
        $region38: #{tpu_custom_call.1} parent=27 // pred_check_branch
          %285 = sbr.rel (%p283) target = $region40
        $region39: #{tpu_custom_call.1} parent=27 // pred_region
          %s287 = ssub.s32 16, 16
          %288 = vsyncadd %s280, %s287
          %s289 = sadd.s32 %s27, %s26
          %s290 = smul.addr %s289, 16
          %s291 = scalar_lea.hbm %s2, %s290
          %s293 = sshll.u32 %s282, 4
          %s294 = int_to_ptr.vmem [resolvable:$true] %s293
          %296 = dma.vmem_to_hbm [thread:$0]  %s294, 16, %s291, %s280
        $region40: #{tpu_custom_call.1} parent=27 // pred_fallthru
          _
      $region28: #{tpu_custom_call.1} parent=5 // pred_fallthru
        _
      %p297 = scmp.le.s32.totalorder 2, %s17
      // Predicated region
      $region41: #{tpu_custom_call.1} parent=5 // pred_check
        %p298 = pneg %p297
      $region42: #{tpu_custom_call.1} parent=5 // pred_check_branch
        %300 = sbr.rel (%p298) target = $region44
      $region43: #{tpu_custom_call.1} parent=5 // pred_region
        %s301 = ssub.s32 %s17, 2
        // Predicated region
        $region45: #{tpu_custom_call.1} parent=43 // pred_check
          %p302 = pneg %p116
        $region46: #{tpu_custom_call.1} parent=43 // pred_check_branch
          %304 = sbr.rel (%p302) target = $region48
        $region47: #{tpu_custom_call.1} parent=43 // pred_region
          %s305 = sand.u32 %s101, 1
          %s306 = scalar_lea.sflag [#allocation4], %s305
          %s307 = sand.u32 %s101, 1
          %s308 = scalar_lea.vmem [#allocation7], %s307
          %309 = dma.done %s306, 16
        $region48: #{tpu_custom_call.1} parent=43 // pred_fallthru
          _
      $region44: #{tpu_custom_call.1} parent=5 // pred_fallthru
        _
    $region6: #{tpu_custom_call.1} parent=1 // loop_footer
      %s21 = sadd.s32 1, %s17
    $region7: #{tpu_custom_call.1} parent=1 // loop_footer_branch
      %16 = sbr.rel target = $region3
    $region8: #{tpu_custom_call.1} parent=1 // loop_exit
      _
    %310 = vsyncpa [#allocation3], 1
    %s311 = scalar_lea.sflag [#allocation3], 1
    %312 = vsyncpa %s311, 1
    %313 = vsyncpa [#allocation6], 1
    %s314 = scalar_lea.sflag [#allocation6], 1
    %315 = vsyncpa %s314, 1
    %316 = vsyncpa [#allocation4], 1
    %s317 = scalar_lea.sflag [#allocation4], 1
    %318 = vsyncpa %s317, 1

</llo_original>
